<compile_context>
chip_gen: v7x
topology: tpu7x:2x2x1
jax: 0.10.0
libtpu: 0.0.40
codegen_flags: <defaults>
</compile_context>

<pallas_src>
import jax
import jax.numpy as jnp
from jax.experimental import pallas as pl
from jax.experimental.pallas import tpu as pltpu

LANE = 128


def _vmem_capacity_bytes() -> int:
    """Physical per-TensorCore VMEM; conservative fallback if query fails."""
    try:
        return int(pltpu.get_tpu_info().vmem_capacity_bytes)
    except Exception:
        return 64 * 1024 * 1024        # v7x per-TC size: safe lower bound


def _default_budget() -> tuple[int, int]:
    """(max_tile_rows, vmem_limit_bytes) sized per TPU generation."""
    vmem = _vmem_capacity_bytes()
    if vmem >= 96 * 1024 * 1024:
        # v5e / v6e: 128 MiB physical VMEM -> 16 MiB tiles (32 MiB double-buffered).
        return 32768, 80 * 1024 * 1024
    # v7x: 64 MiB per TC -> 8 MiB tiles (16 MiB double-buffered), leave headroom.
    return 16384, 40 * 1024 * 1024


def _choose_tiling(rows: int, max_tile_rows: int, n_split: int):
    """Split `rows` into n_split * n_tiles tiles of tile_rows (multiple of 8).

    Returns (tile_rows, n_tiles, rows_padded).  rows_padded >= rows; the wrapper
    zero-pads, so padded rows contribute nothing to the reduction.  This keeps
    the 2-way core split even for row counts that are not multiples of 16.
    """
    rps = -(-rows // n_split)                         # rows per split (ceil)
    tile = min(max_tile_rows, ((rps + 7) // 8) * 8)   # round up to sublane multiple
    tile = max(8, (tile // 8) * 8)
    n_tiles = -(-rps // tile)
    rows_padded = n_split * n_tiles * tile
    return tile, n_tiles, rows_padded


def _make_kernel(single_tile: bool):
    """Kernel over one (tile_rows, 128) slab of w = diag * |amp|^2.

    out (1, 128) accumulates the sublane-reduced partial sum for this split.
    """
    if single_tile:
        # Fast path: one reduction step per split -> direct store, no init/RMW.
        def kernel(w_ref, out_ref):
            out_ref[...] = jnp.sum(w_ref[...], axis=0, keepdims=True)
    else:
        def kernel(w_ref, out_ref):
            k = pl.program_id(1)                      # reduction step within split

            @pl.when(k == 0)
            def _():
                out_ref[...] = jnp.zeros_like(out_ref)

            out_ref[...] += jnp.sum(w_ref[...], axis=0, keepdims=True)
    return kernel


def make_pyq_observable(diag, n_qubits, batch, *, max_tile_rows=None, n_split=2):
    """Build forward(state, values=None) -> (batch,) for a diagonal Pauli observable.

    diag:  (2**n_qubits,) real diagonal (block_to_diagonal result, registered buffer).
    state: complex64, pyqtorch layout (2,)*n_qubits + (batch,).
    """
    dim = 2 ** n_qubits
    diag = jnp.asarray(diag, jnp.float32)
    assert diag.shape == (dim,)
    assert (dim * batch) % LANE == 0, "need 2**n_qubits * batch divisible by 128"
    assert LANE % batch == 0, "lane fold assumes batch divides 128"

    default_tile, vmem_limit = _default_budget()
    if max_tile_rows is None:
        max_tile_rows = default_tile

    rows = (dim * batch) // LANE                      # lane-dense f32 rows
    tile_rows, n_tiles, rows_p = _choose_tiling(rows, max_tile_rows, n_split)

    in_map = lambda s, k: (s * n_tiles + k, 0)
    kernel_call = pl.pallas_call(
        _make_kernel(single_tile=(n_tiles == 1)),
        out_shape=jax.ShapeDtypeStruct((n_split, 1, LANE), jnp.float32),
        grid_spec=pltpu.PrefetchScalarGridSpec(
            num_scalar_prefetch=0,
            grid=(n_split, n_tiles),
            in_specs=[pl.BlockSpec((tile_rows, LANE), in_map)],   # w = diag*|amp|^2
            out_specs=pl.BlockSpec((None, 1, LANE), lambda s, k: (s, 0, 0)),
        ),
        compiler_params=pltpu.CompilerParams(
            dimension_semantics=("parallel", "arbitrary"),
            vmem_limit_bytes=vmem_limit,
        ),
    )

    @jax.jit
    def _run(state, diag_f32):
        # (2,)*n + (batch,) complex64 -> (dim, batch): free reshape, NO transpose.
        s2 = state.reshape(dim, batch)
        # Single streaming fusion over the complex state (the only pass that must
        # exist): read 8 B/amp once, write the 4 B/amp weighted-probability plane.
        re = jnp.real(s2)
        im = jnp.imag(s2)
        w = ((re * re + im * im) * diag_f32[:, None]).astype(jnp.float32)
        # Free reshape to lane-dense layout: flat index f = i*batch + b.
        w = w.reshape(rows, LANE)
        if rows_p != rows:                            # keep the 2-way split alive
            w = jnp.pad(w, ((0, rows_p - rows), (0, 0)))
        parts = kernel_call(w)                        # (n_split, 1, 128)
        lane_acc = jnp.sum(parts, axis=(0, 1))        # (128,)
        # lane l accumulated batch index l % batch -> fold the 128//batch groups.
        return jnp.sum(lane_acc.reshape(LANE // batch, batch), axis=0)

    def forward(state, values=None):    # `values` unused on the diagonal path
        return _run(state, diag)

    return forward


if __name__ == "__main__":
    # ---- main example: n_qubits=10 (dim=1024), batch=8 --------------------
    n_qubits = 10
    batch = 8
    dim = 2 ** n_qubits

    # Deterministic observable: total magnetization sum_q Z_q (diagonal Pauli,
    # non-parametric) -- exactly what block_to_diagonal would produce.
    idx = jnp.arange(dim)
    diag = jnp.zeros((dim,), jnp.float32)
    for q in range(n_qubits):
        bit = (idx >> q) & 1
        diag = diag + (1.0 - 2.0 * bit.astype(jnp.float32))

    # Deterministic normalized random state in pyqtorch layout (2,)*n + (batch,).
    key = jax.random.PRNGKey(0)
    kr, ki = jax.random.split(key)
    sre = jax.random.normal(kr, (dim, batch), dtype=jnp.float32)
    sim = jax.random.normal(ki, (dim, batch), dtype=jnp.float32)
    s = (sre + 1j * sim).astype(jnp.complex64)
    s = s / jnp.sqrt(jnp.sum(jnp.abs(s) ** 2, axis=0, keepdims=True))
    state = s.reshape((2,) * n_qubits + (batch,))

    # Pure-JAX reference of PyQObservable.forward (diag branch + pyq.overlap).
    s2 = state.reshape(dim, batch)
    new_state = diag[:, None].astype(jnp.complex64) * s2
    ref = jnp.real(jnp.sum(jnp.conj(s2) * new_state, axis=0)).astype(jnp.float32)

    # Default tiling: single reduction step per core-split (fast path).
    fwd = make_pyq_observable(diag, n_qubits, batch)
    out = jax.block_until_ready(fwd(state))
    assert out.shape == (batch,)
    assert jnp.allclose(out, ref, atol=1e-4, rtol=1e-4), (out, ref)

    # Forced small tiles -> exercises the multi-step resident-accumulator path.
    fwd_small = make_pyq_observable(diag, n_qubits, batch, max_tile_rows=8)
    out2 = jax.block_until_ready(fwd_small(state))
    assert jnp.allclose(out2, ref, atol=1e-4, rtol=1e-4), (out2, ref)

    # ---- tiny problem: exercises row zero-padding + split with an empty half --
    nq_s, batch_s = 4, 8
    dim_s = 2 ** nq_s
    diag_s = jnp.cos(jnp.arange(dim_s, dtype=jnp.float32))      # arbitrary real diag
    kr2, ki2 = jax.random.split(jax.random.PRNGKey(0))
    ss = (jax.random.normal(kr2, (dim_s, batch_s), jnp.float32)
          + 1j * jax.random.normal(ki2, (dim_s, batch_s), jnp.float32)).astype(jnp.complex64)
    ss = ss / jnp.sqrt(jnp.sum(jnp.abs(ss) ** 2, axis=0, keepdims=True))
    state_s = ss.reshape((2,) * nq_s + (batch_s,))
    ref_s = jnp.sum(diag_s[:, None] * jnp.abs(ss) ** 2, axis=0).astype(jnp.float32)

    fwd_s = make_pyq_observable(diag_s, nq_s, batch_s)
    out_s = jax.block_until_ready(fwd_s(state_s))
    assert jnp.allclose(out_s, ref_s, atol=1e-4, rtol=1e-4), (out_s, ref_s)

    print("KERNEL_OK")
</pallas_src>

<mosaic_0001>
module attributes {stable_mosaic.version = 11 : i64} {
  func.func @kernel(%arg0: i32, %arg1: i32, %arg2: memref<32x128xf32, #tpu.memory_space<vmem>>, %arg3: memref<1x1x128xf32, #tpu.memory_space<vmem>>) attributes {dimension_semantics = [#tpu.dimension_semantics<parallel>, #tpu.dimension_semantics<arbitrary>], iteration_bounds = array<i64: 2, 1>, scalar_prefetch = 0 : i64, scratch_operands = 0 : i64, tpu.core_type = #tpu.core_type<tc>, window_params = [{transform_indices = @transform_0, window_bounds = array<i64: 32, 128>}, {transform_indices = @transform_1, window_bounds = array<i64: 1, 1, 128>}]} {
    %c0 = arith.constant 0 : index
    %c0_0 = arith.constant 0 : index
    %0 = vector.load %arg2[%c0, %c0_0] : memref<32x128xf32, #tpu.memory_space<vmem>>, vector<32x128xf32>
    %cst = arith.constant dense<0.000000e+00> : vector<128xf32>
    %1 = vector.multi_reduction <add>, %0, %cst [0] : vector<32x128xf32> to vector<128xf32>
    %2 = vector.shape_cast %1 : vector<128xf32> to vector<1x128xf32>
    %c0_1 = arith.constant 0 : index
    %c0_2 = arith.constant 0 : index
    %c0_3 = arith.constant 0 : index
    %3 = vector.load %arg3[%c0_1, %c0_2, %c0_3] : memref<1x1x128xf32, #tpu.memory_space<vmem>>, vector<1x1x128xf32>
    %4 = vector.shape_cast %3 : vector<1x1x128xf32> to vector<1x128xf32>
    %5 = vector.shape_cast %2 : vector<1x128xf32> to vector<1x1x128xf32>
    tpu.vector_store %arg3[%c0_1, %c0_2, %c0_3], %5 {strides = array<i32>} : memref<1x1x128xf32, #tpu.memory_space<vmem>>, vector<1x1x128xf32>,
    return
  }
  func.func @transform_0(%arg0: i32, %arg1: i32) -> (i32, i32) {
    %c1_i32 = arith.constant 1 : i32
    %0 = arith.muli %arg0, %c1_i32 : i32
    %1 = arith.addi %0, %arg1 : i32
    %c0_i32 = arith.constant 0 : i32
    %c0_i32_0 = arith.constant 0 : i32
    return %1, %c0_i32 : i32, i32
  }
  func.func @transform_1(%arg0: i32, %arg1: i32) -> (i32, i32, i32) {
    %c0_i32 = arith.constant 0 : i32
    %c0_i32_0 = arith.constant 0 : i32
    %c0_i32_1 = arith.constant 0 : i32
    return %arg0, %c0_i32, %c0_i32_0 : i32, i32, i32
  }
}

</mosaic_0001>

<llo_original>
// kernel: custom-call
$region0: #{custom-call}
  %s0 = inlined_call_operand.hbm [shape: c64[2,2,2,2,2,2,2,2,2,2,8], index: 0, kind: input, shape index: {}]
  %s1 = inlined_call_operand.vmem [shape: f32[2,2,2,2,2,2,2,2,2,2,8], index: 1, kind: output, shape index: {}]
  $region1: #{custom-call} parent=0
    #allocation0 [shape = 's32[1]{0}', space=sflag, size = 0x4, scoped, tag = 'scoped memory for custom-call']
    %2 = vsyncpa [#allocation0], 0
    %s3 = sshll.u32 %s1, 4
    %s4 = int_to_ptr.vmem [resolvable:$true] %s3
    %6 = dma.hbm_to_vmem [thread:$0]  %s0, 16384, %s4, [#allocation0]
    %7 = dma.done [#allocation0], 16384
    %8 = vsyncpa [#allocation0], 1

// kernel: custom-call.1
$region0: #{custom-call.1}
  %s0 = inlined_call_operand.hbm [shape: c64[2,2,2,2,2,2,2,2,2,2,8], index: 0, kind: input, shape index: {}]
  %s1 = inlined_call_operand.vmem [shape: f32[2,2,2,2,2,2,2,2,2,2,8], index: 1, kind: output, shape index: {}]
  %s2 = scalar_lea.hbm %s0, 16384
  $region1: #{custom-call.1} parent=0
    #allocation0 [shape = 's32[1]{0}', space=sflag, size = 0x4, scoped, tag = 'scoped memory for custom-call.1']
    %3 = vsyncpa [#allocation0], 0
    %s4 = sshll.u32 %s1, 4
    %s5 = int_to_ptr.vmem [resolvable:$true] %s4
    %7 = dma.hbm_to_vmem [thread:$0]  %s2, 16384, %s5, [#allocation0]
    %8 = dma.done [#allocation0], 16384
    %9 = vsyncpa [#allocation0], 1

// kernel: mul.2
$region0: #{mul.2}
  #allocation0 [shape = 's32[1]{0}', space=sflag, size = 0x4, scoped, tag = 'scoped memory for mul.2']
  %s0 = inlined_call_operand.vmem [shape: f32[64,128], index: 0, kind: input, shape index: {}]
  %s1 = inlined_call_operand.vmem [shape: f32[64,128], index: 1, kind: input, shape index: {}]
  %s2 = inlined_call_operand.vmem [shape: f32[64,128], index: 2, kind: output, shape index: {}]
  %v3 = vld [vmem:[%s0] sm:$0xff]
  %v4 = vld [vmem:[%s1] sm:$0xff]
  %5 = xla_tuple %v3, %v4
  %6 = xla_tuple %5
  %v7 = vmul.f32 %v3, %v4
  %8 = xla_tuple %v7
  %9 = vst [vmem:[%s2] sm:$0xff] %v7
  %s10 = scalar_lea.vmem %s0, 8
  %v11 = vld [vmem:[%s10] sm:$0xff]
  %s12 = scalar_lea.vmem %s1, 8
  %v13 = vld [vmem:[%s12] sm:$0xff]
  %14 = xla_tuple %v11, %v13
  %15 = xla_tuple %14
  %v16 = vmul.f32 %v11, %v13
  %17 = xla_tuple %v16
  %s18 = scalar_lea.vmem %s2, 8
  %19 = vst [vmem:[%s18] sm:$0xff] %v16
  %s20 = scalar_lea.vmem %s0, 16
  %v21 = vld [vmem:[%s20] sm:$0xff]
  %s22 = scalar_lea.vmem %s1, 16
  %v23 = vld [vmem:[%s22] sm:$0xff]
  %24 = xla_tuple %v21, %v23
  %25 = xla_tuple %24
  %v26 = vmul.f32 %v21, %v23
  %27 = xla_tuple %v26
  %s28 = scalar_lea.vmem %s2, 16
  %29 = vst [vmem:[%s28] sm:$0xff] %v26
  %s30 = scalar_lea.vmem %s0, 24
  %v31 = vld [vmem:[%s30] sm:$0xff]
  %s32 = scalar_lea.vmem %s1, 24
  %v33 = vld [vmem:[%s32] sm:$0xff]
  %34 = xla_tuple %v31, %v33
  %35 = xla_tuple %34
  %v36 = vmul.f32 %v31, %v33
  %37 = xla_tuple %v36
  %s38 = scalar_lea.vmem %s2, 24
  %39 = vst [vmem:[%s38] sm:$0xff] %v36
  %s40 = scalar_lea.vmem %s0, 32
  %v41 = vld [vmem:[%s40] sm:$0xff]
  %s42 = scalar_lea.vmem %s1, 32
  %v43 = vld [vmem:[%s42] sm:$0xff]
  %44 = xla_tuple %v41, %v43
  %45 = xla_tuple %44
  %v46 = vmul.f32 %v41, %v43
  %47 = xla_tuple %v46
  %s48 = scalar_lea.vmem %s2, 32
  %49 = vst [vmem:[%s48] sm:$0xff] %v46
  %s50 = scalar_lea.vmem %s0, 40
  %v51 = vld [vmem:[%s50] sm:$0xff]
  %s52 = scalar_lea.vmem %s1, 40
  %v53 = vld [vmem:[%s52] sm:$0xff]
  %54 = xla_tuple %v51, %v53
  %55 = xla_tuple %54
  %v56 = vmul.f32 %v51, %v53
  %57 = xla_tuple %v56
  %s58 = scalar_lea.vmem %s2, 40
  %59 = vst [vmem:[%s58] sm:$0xff] %v56
  %s60 = scalar_lea.vmem %s0, 48
  %v61 = vld [vmem:[%s60] sm:$0xff]
  %s62 = scalar_lea.vmem %s1, 48
  %v63 = vld [vmem:[%s62] sm:$0xff]
  %64 = xla_tuple %v61, %v63
  %65 = xla_tuple %64
  %v66 = vmul.f32 %v61, %v63
  %67 = xla_tuple %v66
  %s68 = scalar_lea.vmem %s2, 48
  %69 = vst [vmem:[%s68] sm:$0xff] %v66
  %s70 = scalar_lea.vmem %s0, 56
  %v71 = vld [vmem:[%s70] sm:$0xff]
  %s72 = scalar_lea.vmem %s1, 56
  %v73 = vld [vmem:[%s72] sm:$0xff]
  %74 = xla_tuple %v71, %v73
  %75 = xla_tuple %74
  %v76 = vmul.f32 %v71, %v73
  %77 = xla_tuple %v76
  %s78 = scalar_lea.vmem %s2, 56
  %79 = vst [vmem:[%s78] sm:$0xff] %v76

// kernel: _run.1
$region0: #{_run.1}
  #allocation0 [shape = 'u32[]', space=smem, size = 0x4, offset = 0x4, fixed_abs, tag = 'smem constant byte address 0x4 - core index']
  #allocation1 [shape = 'u32[144,128]{1,0:T(1,128)}', space=vmem, size = 0x12000, scoped, tag = 'internal scratch']
  %s0 = inlined_call_operand.vmem [shape: f32[64,128], index: 0, kind: input, shape index: {}]
  %s1 = inlined_call_operand.vmem [shape: f32[2,1,128], index: 1, kind: output, shape index: {}]
  %s2 = sld [smem:[#allocation0]]
  $region37: #{_run.1} parent=0
    _
  %s4 = ssub.s32 1, %s2
  %s5 = scalar_select 0, %s4, %s2
  loop: start=0, step=1, limit=4
  $region2: #{_run.1} parent=0 // loop_pre_header
    _
  $region3: #{_run.1} parent=0 // loop_header
    %s7 = sphi 0, %s11
    %p8 = scmp.ge.s32.totalorder %s7, 4
    %s14 = sphi 0, %s26
    %s15 = sphi 0, %s22
    %s16 = sphi 0, %s14
    %s17 = sphi 0, %s15
    %s18 = sphi 0, %s16
    %s19 = sphi 0, %s17
    %s31 = sphi 0, %s33
    %s34 = sphi 0, %s31
    %s35 = sphi 0, %s34
    %s51 = sphi 0, %s35
    %s57 = sphi 0, %s59
    %s60 = sphi 0, %s57
    %s61 = sphi 0, %s60
    %s77 = sphi 0, %s61
  $region4: #{_run.1} parent=0 // loop_header_branch
    %10 = sbr.rel (%p8) target = $region8
  $region5: #{_run.1} parent=0 // loop_body
    %s12 = ssub.s32 %s7, 1
    %s13 = ssub.s32 %s7, 2
    %s20 = sadd.s32 1, %s15
    %p21 = scmp.ge.s32.totalorder %s20, 1
    %s22 = scalar_select %p21, 0, %s20
    %s23 = sadd.s32 1, %s14
    %s24 = scalar_select %p21, %s23, %s14
    %p25 = scmp.ge.s32.totalorder %s24, 2
    %s26 = scalar_select %p25, 0, %s24
    %s27 = sadd.s32 %s14, %s15
    %s28 = sadd.s32 %s26, %s22
    %s29 = ssub.s32 %s27, %s28
    %p30 = scmp.eq.s32.totalorder %s29, 0
    %s32 = sadd.s32 %s31, 1
    %s33 = scalar_select %p30, %s31, %s32
    %p36 = pneg %p30
    %p37 = scmp.eq.s32.totalorder %s7, 1
    %p38 = por %p36, %p37
    %p39 = scmp.ne.s32.totalorder %s31, %s34
    %p40 = scmp.eq.s32.totalorder %s7, 0
    %p41 = por %p39, %p40
    %p42 = scmp.ne.s32.totalorder %s31, %s34
    %p43 = scmp.eq.s32.totalorder %s12, 1
    %p44 = por %p42, %p43
    %p45 = scmp.ne.s32.totalorder %s34, %s35
    %p46 = scmp.eq.s32.totalorder %s12, 0
    %p47 = por %p45, %p46
    %p48 = scmp.ne.s32.totalorder %s34, %s35
    %p49 = scmp.eq.s32.totalorder %s13, 1
    %p50 = por %p48, %p49
    %p52 = scmp.ne.s32.totalorder %s35, %s51
    %p53 = scmp.eq.s32.totalorder %s13, 0
    %p54 = por %p52, %p53
    %s55 = ssub.s32 %s14, %s26
    %p56 = scmp.eq.s32.totalorder %s55, 0
    %s58 = sadd.s32 %s57, 1
    %s59 = scalar_select %p56, %s57, %s58
    %p62 = pneg %p56
    %p63 = scmp.eq.s32.totalorder %s7, 1
    %p64 = por %p62, %p63
    %p65 = scmp.ne.s32.totalorder %s57, %s60
    %p66 = scmp.eq.s32.totalorder %s7, 0
    %p67 = por %p65, %p66
    %p68 = scmp.ne.s32.totalorder %s57, %s60
    %p69 = scmp.eq.s32.totalorder %s12, 1
    %p70 = por %p68, %p69
    %p71 = scmp.ne.s32.totalorder %s60, %s61
    %p72 = scmp.eq.s32.totalorder %s12, 0
    %p73 = por %p71, %p72
    %p74 = scmp.ne.s32.totalorder %s60, %s61
    %p75 = scmp.eq.s32.totalorder %s13, 1
    %p76 = por %p74, %p75
    %p78 = scmp.ne.s32.totalorder %s61, %s77
    %p79 = scmp.eq.s32.totalorder %s13, 0
    %p80 = por %p78, %p79
    %p81 = scmp.le.s32.totalorder 1, %s7
    %p82 = scmp.lt.s32.totalorder %s7, 3
    %p83 = pnand %p81, %p82
    %p84 = pneg %p83
    // Predicated region
    $region9: #{_run.1} parent=5 // pred_check
      _
    $region10: #{_run.1} parent=5 // pred_check_branch
      %86 = sbr.rel (%p83) target = $region12
    $region11: #{_run.1} parent=5 // pred_region
      %s87 = ssub.s32 %s7, 1
    $region12: #{_run.1} parent=5 // pred_fallthru
      _
    %p88 = scmp.lt.s32.totalorder %s7, 2
    // Predicated region
    $region13: #{_run.1} parent=5 // pred_check
      %p89 = pneg %p88
    $region14: #{_run.1} parent=5 // pred_check_branch
      %91 = sbr.rel (%p89) target = $region16
    $region15: #{_run.1} parent=5 // pred_region
      // Predicated region
      $region17: #{_run.1} parent=15 // pred_check
        %p92 = pneg %p41
      $region18: #{_run.1} parent=15 // pred_check_branch
        %94 = sbr.rel (%p92) target = $region20
      $region19: #{_run.1} parent=15 // pred_region
        %s95 = sadd.s32 %s14, %s15
        %s96 = smul.u32 4, %s95
        %p97 = scmp.lt.s32.totalorder %s96, 7
        %s98 = scalar_select %p97, %s96, 7
        %s99 = smul.addr %s98, 8
        %s100 = scalar_lea.vmem %s0, %s99
        %s101 = sadd.s32 %s14, %s15
        %s102 = smul.u32 4, %s101
      $region20: #{_run.1} parent=15 // pred_fallthru
        _
    $region16: #{_run.1} parent=5 // pred_fallthru
      _
    %p103 = scmp.le.s32.totalorder 1, %s7
    %p104 = scmp.lt.s32.totalorder %s7, 3
    %p105 = pnand %p103, %p104
    %p106 = pneg %p105
    // Predicated region
    $region21: #{_run.1} parent=5 // pred_check
      _
    $region22: #{_run.1} parent=5 // pred_check_branch
      %108 = sbr.rel (%p105) target = $region24
    $region23: #{_run.1} parent=5 // pred_region
      %s109 = ssub.s32 %s7, 1
      %s110 = sadd.s32 %s16, %s17
      %s111 = smul.u32 4, %s110
      %p112 = scmp.lt.s32.totalorder %s111, 7
      %s113 = scalar_select %p112, %s111, 7
      %s114 = smul.addr %s113, 8
      %s115 = scalar_lea.vmem %s0, %s114
      %p116 = pneg %p47
      %p117 = pneg %p44
      %p118 = pneg %p73
      %p119 = pneg %p70
      %p120 = scmp.lt.s32.totalorder %s16, 1
      %s121 = scalar_select %p120, %s16, 1
      %s122 = scalar_lea.vmem %s1, %s121
      %s123 = sadd.s32 %s16, %s17
      %s124 = smul.u32 4, %s123
      %p125 = scmp.lt.s32.totalorder %s124, 7
      %s126 = scalar_select %p125, %s124, 7
      %s127 = smul.addr %s126, 8
      %s128 = scalar_lea.vmem %s0, %s127
      %s129 = sadd.s32 %s16, %s17
      %s130 = smul.u32 4, %s129
      %p131 = scmp.lt.s32.totalorder %s16, 1
      %s132 = scalar_select %p131, %s16, 1
      %s133 = scalar_lea.vmem %s1, %s132
      %v134 = vld [vmem:[%s128] sm:$0xff]
      %v135 = vld [vmem:[%s128 + $0x8] sm:$0xff]
      %v136 = vld [vmem:[%s128 + $0x10] sm:$0xff]
      %v137 = vld [vmem:[%s128 + $0x18] sm:$0xff]
      %v138 = vadd.f32 %v134, %v135
      %v139 = vadd.f32 %v138, %v136
      %v140 = vadd.f32 %v139, %v137
      %v141 = vrot.slane %v140, 4
      %v142 = vadd.f32 %v140, %v141
      %v143 = vrot.slane %v142, 2
      %v144 = vadd.f32 %v142, %v143
      %v145 = vrot.slane %v144, 1
      %v146 = vadd.f32 %v144, %v145
      %147 = vst [vmem:[%s133] sm:$0x1] %v146
      %p148 = scmp.lt.s32.totalorder %s16, 1
      %s149 = scalar_select %p148, %s16, 1
      %s150 = scalar_lea.vmem %s1, %s149
      // Predicated region
      $region25: #{_run.1} parent=23 // pred_check
        %p151 = pneg %p70
      $region26: #{_run.1} parent=23 // pred_check_branch
        %153 = sbr.rel (%p151) target = $region28
      $region27: #{_run.1} parent=23 // pred_region
        _
      $region28: #{_run.1} parent=23 // pred_fallthru
        _
    $region24: #{_run.1} parent=5 // pred_fallthru
      _
    %p154 = scmp.le.s32.totalorder 2, %s7
    // Predicated region
    $region29: #{_run.1} parent=5 // pred_check
      %p155 = pneg %p154
    $region30: #{_run.1} parent=5 // pred_check_branch
      %157 = sbr.rel (%p155) target = $region32
    $region31: #{_run.1} parent=5 // pred_region
      %s158 = ssub.s32 %s7, 2
      // Predicated region
      $region33: #{_run.1} parent=31 // pred_check
        %p159 = pneg %p76
      $region34: #{_run.1} parent=31 // pred_check_branch
        %161 = sbr.rel (%p159) target = $region36
      $region35: #{_run.1} parent=31 // pred_region
        %p162 = scmp.lt.s32.totalorder %s18, 1
        %s163 = scalar_select %p162, %s18, 1
        %s164 = scalar_lea.vmem %s1, %s163
      $region36: #{_run.1} parent=31 // pred_fallthru
        _
    $region32: #{_run.1} parent=5 // pred_fallthru
      _
  $region6: #{_run.1} parent=0 // loop_footer
    %s11 = sadd.s32 1, %s7
  $region7: #{_run.1} parent=0 // loop_footer_branch
    %6 = sbr.rel target = $region3
  $region8: #{_run.1} parent=0 // loop_exit
    _

</llo_original>
